<compile_context>
chip_gen: v5e
topology: v5e:2x2
jax: 0.10.0
libtpu: 0.0.40
codegen_flags: <defaults>
</compile_context>

<pallas_src>
import functools

import jax
import jax.numpy as jnp
from jax.experimental import pallas as pl
from jax.experimental.pallas import tpu as pltpu

SMOOTH = 1.0
LANE = 128


def _dice_kernel(p_ref, t_ref, num_ref, den_ref, num_acc, den_acc,
                 *, rows, tile_rows, k_tiles):
    """Accumulate sum(p*t) and sum(p*p + t*t) for one (sample, row-tile) block."""
    k = pl.program_id(1)

    p = p_ref[0].astype(jnp.float32)            # (tile_rows, LANE)
    t = t_ref[0].astype(jnp.float32)
    prod = p * t
    sq = p * p + t * t                          # NOT (p+t)^2 - 2pt: avoids cancellation

    def _write(num, den):
        num_ref[...] = jnp.full((1, 1, LANE), num, num_ref.dtype)
        den_ref[...] = jnp.full((1, 1, LANE), den, den_ref.dtype)

    if k_tiles == 1:
        # Whole sample fits one tile (tile_rows == rows): skip accumulator
        # init/finalize and all scratch traffic.
        _write(jnp.sum(prod), jnp.sum(sq))
        return

    @pl.when(k == 0)
    def _init():
        num_acc[...] = jnp.zeros_like(num_acc)
        den_acc[...] = jnp.zeros_like(den_acc)

    def _accumulate(pr, sv):
        # Free reshape (sublane-tile grouping) + pure vreg adds: no cross-lane
        # work and only one small (8,128) accumulator RMW per chunk.
        num_acc[...] += pr.reshape(tile_rows // 8, 8, LANE).sum(axis=0)
        den_acc[...] += sv.reshape(tile_rows // 8, 8, LANE).sum(axis=0)

    if rows % tile_rows == 0:
        _accumulate(prod, sq)
    else:
        # Only the ragged last tile pays for the iota + compares + selects.
        @pl.when(k < k_tiles - 1)
        def _full():
            _accumulate(prod, sq)

        @pl.when(k == k_tiles - 1)
        def _ragged():
            row_ids = jax.lax.broadcasted_iota(jnp.int32, (tile_rows, LANE), 0)
            valid = (k * tile_rows + row_ids) < rows
            # where() after the multiply is safe: garbage (NaN/Inf) is discarded
            # by the select, never accumulated.
            _accumulate(jnp.where(valid, prod, 0.0), jnp.where(valid, sq, 0.0))

    @pl.when(k == k_tiles - 1)
    def _finalize():
        _write(jnp.sum(num_acc[...]), jnp.sum(den_acc[...]))


def _default_max_tile_rows(itemsize):
    """Largest row-tile whose two double-buffered input streams fit a
    conservative per-generation VMEM budget (v5e/v6e: 16 MiB, v7x: 8 MiB)."""
    vmem_bytes = 128 << 20
    try:  # trace-time hardware query; fall back to v5e/v6e capacity.
        vmem_bytes = int(getattr(pltpu.get_tpu_info(), "vmem_capacity_bytes",
                                 vmem_bytes))
    except Exception:
        pass
    budget = min(vmem_bytes // 8, 16 << 20)
    tile_rows = budget // (2 * 2 * LANE * itemsize)   # 2 inputs x 2 buffers
    return int(max(8, min(8192, (tile_rows // 8) * 8)))


@functools.partial(jax.jit, static_argnames=("max_tile_rows",))
def dice_loss(predict, target, max_tile_rows=None):
    assert predict.shape[0] == target.shape[0], (
        "error: the batch-size of predict and target don't match")
    b = predict.shape[0]
    p = predict.reshape(b, -1)
    t = target.reshape(b, -1)
    n = p.shape[1]

    # Lane-dense (rows, 128) view per sample.  For the usual C*H*W % 128 == 0
    # this reshape is free.
    # TODO(synk): for n % 128 != 0 this pad still costs one extra HBM pass over
    # both inputs; a fully pad-free path needs a flat-offset manual-DMA gather
    # with an in-kernel lane mask.
    pad = (-n) % LANE
    if pad:
        p = jnp.pad(p, ((0, 0), (0, pad)))
        t = jnp.pad(t, ((0, 0), (0, pad)))
    rows = (n + pad) // LANE

    # v7x has 2 TensorCores: with batch == 1 a batch-parallel grid would leave
    # one idle, so split the sample's rows in two (free reshape) and combine
    # the partial sums in the wrapper.  No effect on v5e/v6e (1 TC).
    splits = 2 if (b == 1 and rows % 2 == 0 and rows >= 16) else 1
    bp = b * splits
    rows_s = rows // splits
    p = p.reshape(bp, rows_s, LANE)
    t = t.reshape(bp, rows_s, LANE)

    itemsize = max(jnp.dtype(p.dtype).itemsize, jnp.dtype(t.dtype).itemsize)
    if max_tile_rows is None:
        max_tile_rows = _default_max_tile_rows(itemsize)

    if rows_s <= max_tile_rows:
        tile_rows = rows_s                      # full-dim block: always legal
        k_tiles = 1
    else:
        tile_rows = max(8, (max_tile_rows // 8) * 8)   # multiple of 8 for the fold
        k_tiles = pl.cdiv(rows_s, tile_rows)

    kernel = functools.partial(_dice_kernel, rows=rows_s, tile_rows=tile_rows,
                               k_tiles=k_tiles)

    elems = bp * rows_s * LANE
    bytes_accessed = (elems * (jnp.dtype(p.dtype).itemsize
                               + jnp.dtype(t.dtype).itemsize)
                      + 2 * bp * LANE * 4)
    cost = pl.CostEstimate(flops=5 * elems, transcendentals=0,
                           bytes_accessed=int(bytes_accessed))

    vmem_need = (2 * 2 * tile_rows * LANE * itemsize    # input double-buffers
                 + 2 * 2 * LANE * 4                     # output blocks
                 + 2 * 8 * LANE * 4)                    # (8,128) accumulators
    vmem_limit = int(min(max(vmem_need + (8 << 20), 32 << 20), 48 << 20))

    num_p, den_p = pl.pallas_call(
        kernel,
        out_shape=(jax.ShapeDtypeStruct((bp, 1, LANE), jnp.float32),
                   jax.ShapeDtypeStruct((bp, 1, LANE), jnp.float32)),
        grid_spec=pltpu.PrefetchScalarGridSpec(
            num_scalar_prefetch=0,
            grid=(bp, k_tiles),
            in_specs=[
                pl.BlockSpec((1, tile_rows, LANE), lambda bi, ki: (bi, ki, 0)),
                pl.BlockSpec((1, tile_rows, LANE), lambda bi, ki: (bi, ki, 0)),
            ],
            out_specs=[
                pl.BlockSpec((1, 1, LANE), lambda bi, ki: (bi, 0, 0)),
                pl.BlockSpec((1, 1, LANE), lambda bi, ki: (bi, 0, 0)),
            ],
            scratch_shapes=[
                pltpu.VMEM((8, LANE), jnp.float32),
                pltpu.VMEM((8, LANE), jnp.float32),
            ],
        ),
        compiler_params=pltpu.CompilerParams(
            dimension_semantics=("parallel", "arbitrary"),
            vmem_limit_bytes=vmem_limit,
        ),
        cost_estimate=cost,
    )(p, t)

    num = num_p[:, 0, 0].reshape(b, splits).sum(axis=1)
    den = den_p[:, 0, 0].reshape(b, splits).sum(axis=1)
    return 1.0 - (num + SMOOTH) / (den + SMOOTH)


def _reference(predict, target):
    b = predict.shape[0]
    p = predict.reshape(b, -1).astype(jnp.float32)
    t = target.reshape(b, -1).astype(jnp.float32)
    num = jnp.sum(p * t, axis=1) + SMOOTH
    den = jnp.sum(p * p + t * t, axis=1) + SMOOTH
    return 1.0 - num / den


if __name__ == "__main__":
    key = jax.random.PRNGKey(0)
    kp, kt = jax.random.split(key)

    # NCHW inputs, consistent with the PyTorch module's usage.
    predict = jax.nn.sigmoid(jax.random.normal(kp, (2, 4, 16, 16), jnp.float32))
    target = (jax.random.uniform(kt, (2, 4, 16, 16)) > 0.5).astype(jnp.float32)
    out = dice_loss(predict, target)
    jax.block_until_ready(out)
    ref = _reference(predict, target)
    assert out.shape == (2,)
    assert jnp.allclose(out, ref, atol=1e-5, rtol=1e-5), (out, ref)

    # Multi-tile + ragged last tile (rows=10, tile_rows=8 -> gated mask path).
    kp2, kt2 = jax.random.split(jax.random.PRNGKey(1))
    predict2 = jax.nn.sigmoid(jax.random.normal(kp2, (2, 5, 16, 16), jnp.float32))
    target2 = (jax.random.uniform(kt2, (2, 5, 16, 16)) > 0.5).astype(jnp.float32)
    out2 = dice_loss(predict2, target2, max_tile_rows=8)
    jax.block_until_ready(out2)
    assert jnp.allclose(out2, _reference(predict2, target2), atol=1e-5, rtol=1e-5)

    # batch == 1: rows split across two grid rows (feeds both v7x TensorCores).
    kp3, kt3 = jax.random.split(jax.random.PRNGKey(2))
    predict3 = jax.nn.sigmoid(jax.random.normal(kp3, (1, 8, 16, 16), jnp.float32))
    target3 = (jax.random.uniform(kt3, (1, 8, 16, 16)) > 0.5).astype(jnp.float32)
    out3 = dice_loss(predict3, target3)
    jax.block_until_ready(out3)
    assert jnp.allclose(out3, _reference(predict3, target3), atol=1e-5, rtol=1e-5)

    # bf16 storage dtype fed straight through (in-kernel f32 accumulation).
    out4 = dice_loss(predict.astype(jnp.bfloat16), target.astype(jnp.bfloat16))
    jax.block_until_ready(out4)
    ref4 = _reference(predict.astype(jnp.bfloat16), target.astype(jnp.bfloat16))
    assert jnp.allclose(out4, ref4, atol=1e-4, rtol=1e-4)

    # Tail-pad path (n % 128 != 0).
    kp5, kt5 = jax.random.split(jax.random.PRNGKey(3))
    predict5 = jax.nn.sigmoid(jax.random.normal(kp5, (2, 3, 7, 5), jnp.float32))
    target5 = (jax.random.uniform(kt5, (2, 3, 7, 5)) > 0.5).astype(jnp.float32)
    out5 = dice_loss(predict5, target5)
    jax.block_until_ready(out5)
    assert jnp.allclose(out5, _reference(predict5, target5), atol=1e-5, rtol=1e-5)

    print("KERNEL_OK")
</pallas_src>

<mosaic_0001>
module attributes {stable_mosaic.version = 11 : i64} {
  func.func @_dice_kernel(%arg0: i32, %arg1: i32, %arg2: memref<1x8x128xf32, #tpu.memory_space<vmem>>, %arg3: memref<1x8x128xf32, #tpu.memory_space<vmem>>, %arg4: memref<1x1x128xf32, #tpu.memory_space<vmem>>, %arg5: memref<1x1x128xf32, #tpu.memory_space<vmem>>, %arg6: memref<8x128xf32, #tpu.memory_space<vmem>>, %arg7: memref<8x128xf32, #tpu.memory_space<vmem>>) attributes {dimension_semantics = [#tpu.dimension_semantics<parallel>, #tpu.dimension_semantics<arbitrary>], iteration_bounds = array<i64: 2, 1>, scalar_prefetch = 0 : i64, scratch_operands = 2 : i64, tpu.core_type = #tpu.core_type<tc>, window_params = [{transform_indices = @transform_0, window_bounds = array<i64: 1, 8, 128>}, {transform_indices = @transform_1, window_bounds = array<i64: 1, 8, 128>}, {transform_indices = @transform_2, window_bounds = array<i64: 1, 1, 128>}, {transform_indices = @transform_3, window_bounds = array<i64: 1, 1, 128>}]} {
    %c0 = arith.constant 0 : index
    %c0_0 = arith.constant 0 : index
    %c0_1 = arith.constant 0 : index
    %0 = vector.load %arg2[%c0, %c0_0, %c0_1] : memref<1x8x128xf32, #tpu.memory_space<vmem>>, vector<1x8x128xf32>
    %1 = vector.shape_cast %0 : vector<1x8x128xf32> to vector<8x128xf32>
    %c0_2 = arith.constant 0 : index
    %c0_3 = arith.constant 0 : index
    %c0_4 = arith.constant 0 : index
    %2 = vector.load %arg3[%c0_2, %c0_3, %c0_4] : memref<1x8x128xf32, #tpu.memory_space<vmem>>, vector<1x8x128xf32>
    %3 = vector.shape_cast %2 : vector<1x8x128xf32> to vector<8x128xf32>
    %4 = arith.mulf %1, %3 : vector<8x128xf32>
    %5 = arith.mulf %1, %1 : vector<8x128xf32>
    %6 = arith.mulf %3, %3 : vector<8x128xf32>
    %7 = arith.addf %5, %6 : vector<8x128xf32>
    %8 = vector.shape_cast %4 : vector<8x128xf32> to vector<1x8x128xf32>
    %cst = arith.constant dense<0.000000e+00> : vector<1xf32>
    %9 = vector.multi_reduction <add>, %8, %cst [1, 2] : vector<1x8x128xf32> to vector<1xf32>
    %10 = vector.shape_cast %9 : vector<1xf32> to vector<1x1x1xf32>
    %11 = vector.extract %10[0, 0, 0] : f32 from vector<1x1x1xf32>
    %12 = vector.shape_cast %7 : vector<8x128xf32> to vector<1x8x128xf32>
    %cst_5 = arith.constant dense<0.000000e+00> : vector<1xf32>
    %13 = vector.multi_reduction <add>, %12, %cst_5 [1, 2] : vector<1x8x128xf32> to vector<1xf32>
    %14 = vector.shape_cast %13 : vector<1xf32> to vector<1x1x1xf32>
    %15 = vector.extract %14[0, 0, 0] : f32 from vector<1x1x1xf32>
    %16 = vector.broadcast %11 : f32 to vector<1x1x128xf32>
    %c0_6 = arith.constant 0 : index
    %c0_7 = arith.constant 0 : index
    %c0_8 = arith.constant 0 : index
    %17 = vector.load %arg4[%c0_6, %c0_7, %c0_8] : memref<1x1x128xf32, #tpu.memory_space<vmem>>, vector<1x1x128xf32>
    tpu.vector_store %arg4[%c0_6, %c0_7, %c0_8], %16 {strides = array<i32>} : memref<1x1x128xf32, #tpu.memory_space<vmem>>, vector<1x1x128xf32>,
    %18 = vector.broadcast %15 : f32 to vector<1x1x128xf32>
    %c0_9 = arith.constant 0 : index
    %c0_10 = arith.constant 0 : index
    %c0_11 = arith.constant 0 : index
    %19 = vector.load %arg5[%c0_9, %c0_10, %c0_11] : memref<1x1x128xf32, #tpu.memory_space<vmem>>, vector<1x1x128xf32>
    tpu.vector_store %arg5[%c0_9, %c0_10, %c0_11], %18 {strides = array<i32>} : memref<1x1x128xf32, #tpu.memory_space<vmem>>, vector<1x1x128xf32>,
    return
  }
  func.func @transform_0(%arg0: i32, %arg1: i32) -> (i32, i32, i32) {
    %c0_i32 = arith.constant 0 : i32
    %c0_i32_0 = arith.constant 0 : i32
    return %arg0, %arg1, %c0_i32 : i32, i32, i32
  }
  func.func @transform_1(%arg0: i32, %arg1: i32) -> (i32, i32, i32) {
    %c0_i32 = arith.constant 0 : i32
    %c0_i32_0 = arith.constant 0 : i32
    return %arg0, %arg1, %c0_i32 : i32, i32, i32
  }
  func.func @transform_2(%arg0: i32, %arg1: i32) -> (i32, i32, i32) {
    %c0_i32 = arith.constant 0 : i32
    %c0_i32_0 = arith.constant 0 : i32
    %c0_i32_1 = arith.constant 0 : i32
    return %arg0, %c0_i32, %c0_i32_0 : i32, i32, i32
  }
  func.func @transform_3(%arg0: i32, %arg1: i32) -> (i32, i32, i32) {
    %c0_i32 = arith.constant 0 : i32
    %c0_i32_0 = arith.constant 0 : i32
    %c0_i32_1 = arith.constant 0 : i32
    return %arg0, %c0_i32, %c0_i32_0 : i32, i32, i32
  }
}

</mosaic_0001>

<llo_original>
// kernel: dice_loss.1
$region0: #{dice_loss.1}
  #allocation0 [shape = 'u32[]', space=smem, size = 0x4, offset = 0x4, fixed_abs, tag = 'smem constant byte address 0x4 - core index']
  #allocation1 [shape = 'u32[72,128]{1,0:T(1,128)}', space=vmem, size = 0x9000, scoped, tag = 'internal scratch']
  #allocation2 [shape = 'f32[8,128]{1,0:T(8,128)}', space=vmem, size = 0x1000, scoped, tag = 'scratch operand']
  #allocation3 [shape = 'f32[8,128]{1,0:T(8,128)}', space=vmem, size = 0x1000, scoped, tag = 'scratch operand']
  %s0 = inlined_call_operand.vmem [shape: f32[2,8,128], index: 0, kind: input, shape index: {}]
  %s1 = inlined_call_operand.vmem [shape: f32[2,8,128], index: 1, kind: input, shape index: {}]
  %s2 = inlined_call_operand.vmem [shape: f32[2,1,128], index: 2, kind: output, shape index: {0}]
  %s3 = inlined_call_operand.vmem [shape: f32[2,1,128], index: 3, kind: output, shape index: {1}]
  %4 = xla_tuple %s2, %s3
  %s5 = sld [smem:[#allocation0]]
  $region49: #{dice_loss.1} parent=0
    _
  %s7 = ssub.s32 1, %s5
  %s8 = scalar_select 0, %s7, %s5
  loop: start=0, step=1, limit=4
  $region2: #{dice_loss.1} parent=0 // loop_pre_header
    _
  $region3: #{dice_loss.1} parent=0 // loop_header
    %s10 = sphi 0, %s14
    %p11 = scmp.ge.s32.totalorder %s10, 4
    %s17 = sphi 0, %s29
    %s18 = sphi 0, %s25
    %s19 = sphi 0, %s17
    %s20 = sphi 0, %s18
    %s21 = sphi 0, %s19
    %s22 = sphi 0, %s20
    %s34 = sphi 0, %s36
    %s37 = sphi 0, %s34
    %s38 = sphi 0, %s37
    %s54 = sphi 0, %s38
    %s62 = sphi 0, %s64
    %s65 = sphi 0, %s62
    %s66 = sphi 0, %s65
    %s82 = sphi 0, %s66
    %s88 = sphi 0, %s90
    %s91 = sphi 0, %s88
    %s92 = sphi 0, %s91
    %s108 = sphi 0, %s92
    %s114 = sphi 0, %s116
    %s117 = sphi 0, %s114
    %s118 = sphi 0, %s117
    %s134 = sphi 0, %s118
  $region4: #{dice_loss.1} parent=0 // loop_header_branch
    %13 = sbr.rel (%p11) target = $region8
  $region5: #{dice_loss.1} parent=0 // loop_body
    %s15 = ssub.s32 %s10, 1
    %s16 = ssub.s32 %s10, 2
    %s23 = sadd.s32 1, %s18
    %p24 = scmp.ge.s32.totalorder %s23, 1
    %s25 = scalar_select %p24, 0, %s23
    %s26 = sadd.s32 1, %s17
    %s27 = scalar_select %p24, %s26, %s17
    %p28 = scmp.ge.s32.totalorder %s27, 2
    %s29 = scalar_select %p28, 0, %s27
    %s30 = ssub.s32 %s17, %s29
    %s31 = ssub.s32 %s18, %s25
    %s32 = sor.u32 %s30, %s31
    %p33 = scmp.eq.s32.totalorder %s32, 0
    %s35 = sadd.s32 %s34, 1
    %s36 = scalar_select %p33, %s34, %s35
    %p39 = pneg %p33
    %p40 = scmp.eq.s32.totalorder %s10, 1
    %p41 = por %p39, %p40
    %p42 = scmp.ne.s32.totalorder %s34, %s37
    %p43 = scmp.eq.s32.totalorder %s10, 0
    %p44 = por %p42, %p43
    %p45 = scmp.ne.s32.totalorder %s34, %s37
    %p46 = scmp.eq.s32.totalorder %s15, 1
    %p47 = por %p45, %p46
    %p48 = scmp.ne.s32.totalorder %s37, %s38
    %p49 = scmp.eq.s32.totalorder %s15, 0
    %p50 = por %p48, %p49
    %p51 = scmp.ne.s32.totalorder %s37, %s38
    %p52 = scmp.eq.s32.totalorder %s16, 1
    %p53 = por %p51, %p52
    %p55 = scmp.ne.s32.totalorder %s38, %s54
    %p56 = scmp.eq.s32.totalorder %s16, 0
    %p57 = por %p55, %p56
    %s58 = ssub.s32 %s17, %s29
    %s59 = ssub.s32 %s18, %s25
    %s60 = sor.u32 %s58, %s59
    %p61 = scmp.eq.s32.totalorder %s60, 0
    %s63 = sadd.s32 %s62, 1
    %s64 = scalar_select %p61, %s62, %s63
    %p67 = pneg %p61
    %p68 = scmp.eq.s32.totalorder %s10, 1
    %p69 = por %p67, %p68
    %p70 = scmp.ne.s32.totalorder %s62, %s65
    %p71 = scmp.eq.s32.totalorder %s10, 0
    %p72 = por %p70, %p71
    %p73 = scmp.ne.s32.totalorder %s62, %s65
    %p74 = scmp.eq.s32.totalorder %s15, 1
    %p75 = por %p73, %p74
    %p76 = scmp.ne.s32.totalorder %s65, %s66
    %p77 = scmp.eq.s32.totalorder %s15, 0
    %p78 = por %p76, %p77
    %p79 = scmp.ne.s32.totalorder %s65, %s66
    %p80 = scmp.eq.s32.totalorder %s16, 1
    %p81 = por %p79, %p80
    %p83 = scmp.ne.s32.totalorder %s66, %s82
    %p84 = scmp.eq.s32.totalorder %s16, 0
    %p85 = por %p83, %p84
    %s86 = ssub.s32 %s17, %s29
    %p87 = scmp.eq.s32.totalorder %s86, 0
    %s89 = sadd.s32 %s88, 1
    %s90 = scalar_select %p87, %s88, %s89
    %p93 = pneg %p87
    %p94 = scmp.eq.s32.totalorder %s10, 1
    %p95 = por %p93, %p94
    %p96 = scmp.ne.s32.totalorder %s88, %s91
    %p97 = scmp.eq.s32.totalorder %s10, 0
    %p98 = por %p96, %p97
    %p99 = scmp.ne.s32.totalorder %s88, %s91
    %p100 = scmp.eq.s32.totalorder %s15, 1
    %p101 = por %p99, %p100
    %p102 = scmp.ne.s32.totalorder %s91, %s92
    %p103 = scmp.eq.s32.totalorder %s15, 0
    %p104 = por %p102, %p103
    %p105 = scmp.ne.s32.totalorder %s91, %s92
    %p106 = scmp.eq.s32.totalorder %s16, 1
    %p107 = por %p105, %p106
    %p109 = scmp.ne.s32.totalorder %s92, %s108
    %p110 = scmp.eq.s32.totalorder %s16, 0
    %p111 = por %p109, %p110
    %s112 = ssub.s32 %s17, %s29
    %p113 = scmp.eq.s32.totalorder %s112, 0
    %s115 = sadd.s32 %s114, 1
    %s116 = scalar_select %p113, %s114, %s115
    %p119 = pneg %p113
    %p120 = scmp.eq.s32.totalorder %s10, 1
    %p121 = por %p119, %p120
    %p122 = scmp.ne.s32.totalorder %s114, %s117
    %p123 = scmp.eq.s32.totalorder %s10, 0
    %p124 = por %p122, %p123
    %p125 = scmp.ne.s32.totalorder %s114, %s117
    %p126 = scmp.eq.s32.totalorder %s15, 1
    %p127 = por %p125, %p126
    %p128 = scmp.ne.s32.totalorder %s117, %s118
    %p129 = scmp.eq.s32.totalorder %s15, 0
    %p130 = por %p128, %p129
    %p131 = scmp.ne.s32.totalorder %s117, %s118
    %p132 = scmp.eq.s32.totalorder %s16, 1
    %p133 = por %p131, %p132
    %p135 = scmp.ne.s32.totalorder %s118, %s134
    %p136 = scmp.eq.s32.totalorder %s16, 0
    %p137 = por %p135, %p136
    %p138 = scmp.le.s32.totalorder 1, %s10
    %p139 = scmp.lt.s32.totalorder %s10, 3
    %p140 = pnand %p138, %p139
    %p141 = pneg %p140
    // Predicated region
    $region9: #{dice_loss.1} parent=5 // pred_check
      _
    $region10: #{dice_loss.1} parent=5 // pred_check_branch
      %143 = sbr.rel (%p140) target = $region12
    $region11: #{dice_loss.1} parent=5 // pred_region
      %s144 = ssub.s32 %s10, 1
    $region12: #{dice_loss.1} parent=5 // pred_fallthru
      _
    %p145 = scmp.lt.s32.totalorder %s10, 2
    // Predicated region
    $region13: #{dice_loss.1} parent=5 // pred_check
      %p146 = pneg %p145
    $region14: #{dice_loss.1} parent=5 // pred_check_branch
      %148 = sbr.rel (%p146) target = $region16
    $region15: #{dice_loss.1} parent=5 // pred_region
      // Predicated region
      $region17: #{dice_loss.1} parent=15 // pred_check
        %p149 = pneg %p44
      $region18: #{dice_loss.1} parent=15 // pred_check_branch
        %151 = sbr.rel (%p149) target = $region20
      $region19: #{dice_loss.1} parent=15 // pred_region
        %p152 = scmp.lt.s32.totalorder %s17, 1
        %s153 = scalar_select %p152, %s17, 1
        %p154 = scmp.lt.s32.totalorder %s18, 0
        %s155 = scalar_select %p154, %s18, 0
        %s156 = sadd.s32 %s155, %s153
        %s157 = smul.addr %s156, 8
        %s158 = scalar_lea.vmem %s0, %s157
      $region20: #{dice_loss.1} parent=15 // pred_fallthru
        _
      // Predicated region
      $region21: #{dice_loss.1} parent=15 // pred_check
        %p159 = pneg %p72
      $region22: #{dice_loss.1} parent=15 // pred_check_branch
        %161 = sbr.rel (%p159) target = $region24
      $region23: #{dice_loss.1} parent=15 // pred_region
        %p162 = scmp.lt.s32.totalorder %s17, 1
        %s163 = scalar_select %p162, %s17, 1
        %p164 = scmp.lt.s32.totalorder %s18, 0
        %s165 = scalar_select %p164, %s18, 0
        %s166 = sadd.s32 %s165, %s163
        %s167 = smul.addr %s166, 8
        %s168 = scalar_lea.vmem %s1, %s167
      $region24: #{dice_loss.1} parent=15 // pred_fallthru
        _
    $region16: #{dice_loss.1} parent=5 // pred_fallthru
      _
    %p169 = scmp.le.s32.totalorder 1, %s10
    %p170 = scmp.lt.s32.totalorder %s10, 3
    %p171 = pnand %p169, %p170
    %p172 = pneg %p171
    // Predicated region
    $region25: #{dice_loss.1} parent=5 // pred_check
      _
    $region26: #{dice_loss.1} parent=5 // pred_check_branch
      %174 = sbr.rel (%p171) target = $region28
    $region27: #{dice_loss.1} parent=5 // pred_region
      %s175 = ssub.s32 %s10, 1
      %p176 = scmp.lt.s32.totalorder %s19, 1
      %s177 = scalar_select %p176, %s19, 1
      %p178 = scmp.lt.s32.totalorder %s20, 0
      %s179 = scalar_select %p178, %s20, 0
      %s180 = sadd.s32 %s179, %s177
      %s181 = smul.addr %s180, 8
      %s182 = scalar_lea.vmem %s0, %s181
      %p183 = pneg %p50
      %p184 = pneg %p47
      %p185 = scmp.lt.s32.totalorder %s19, 1
      %s186 = scalar_select %p185, %s19, 1
      %p187 = scmp.lt.s32.totalorder %s20, 0
      %s188 = scalar_select %p187, %s20, 0
      %s189 = sadd.s32 %s188, %s186
      %s190 = smul.addr %s189, 8
      %s191 = scalar_lea.vmem %s1, %s190
      %p192 = pneg %p78
      %p193 = pneg %p75
      %p194 = pneg %p104
      %p195 = pneg %p101
      %p196 = scmp.lt.s32.totalorder %s19, 1
      %s197 = scalar_select %p196, %s19, 1
      %s198 = scalar_lea.vmem %s2, %s197
      %p199 = pneg %p130
      %p200 = pneg %p127
      %p201 = scmp.lt.s32.totalorder %s19, 1
      %s202 = scalar_select %p201, %s19, 1
      %s203 = scalar_lea.vmem %s3, %s202
      %p204 = scmp.lt.s32.totalorder %s19, 1
      %s205 = scalar_select %p204, %s19, 1
      %p206 = scmp.lt.s32.totalorder %s20, 0
      %s207 = scalar_select %p206, %s20, 0
      %s208 = sadd.s32 %s207, %s205
      %s209 = smul.addr %s208, 8
      %s210 = scalar_lea.vmem %s0, %s209
      %p211 = scmp.lt.s32.totalorder %s19, 1
      %s212 = scalar_select %p211, %s19, 1
      %p213 = scmp.lt.s32.totalorder %s20, 0
      %s214 = scalar_select %p213, %s20, 0
      %s215 = sadd.s32 %s214, %s212
      %s216 = smul.addr %s215, 8
      %s217 = scalar_lea.vmem %s1, %s216
      %p218 = scmp.lt.s32.totalorder %s19, 1
      %s219 = scalar_select %p218, %s19, 1
      %s220 = scalar_lea.vmem %s2, %s219
      %p221 = scmp.lt.s32.totalorder %s19, 1
      %s222 = scalar_select %p221, %s19, 1
      %s223 = scalar_lea.vmem %s3, %s222
      %v224 = vld [vmem:[%s210] sm:$0xff]
      %v225 = vld [vmem:[%s217] sm:$0xff]
      %v226 = vmul.f32 %v224, %v225
      %v227 = vmul.f32 %v224, %v224
      %v228 = vmul.f32 %v225, %v225
      %v229 = vadd.f32 %v227, %v228
      %230 = vadd.xlane.f32.xlu0 %v226
      %v231 = vpop.xlane.xlu0 %230
      %v232 = vrot.slane %v231, 4
      %v233 = vadd.f32 %v231, %v232
      %v234 = vrot.slane %v233, 2
      %v235 = vadd.f32 %v233, %v234
      %v236 = vrot.slane %v235, 1
      %v237 = vadd.f32 %v235, %v236
      %s238 = vtos %v237
      %239 = vadd.xlane.f32.xlu0 %v229
      %v240 = vpop.xlane.xlu0 %239
      %v241 = vrot.slane %v240, 4
      %v242 = vadd.f32 %v240, %v241
      %v243 = vrot.slane %v242, 2
      %v244 = vadd.f32 %v242, %v243
      %v245 = vrot.slane %v244, 1
      %v246 = vadd.f32 %v244, %v245
      %s247 = vtos %v246
      %v248 = vstv %s238
      %249 = vst [vmem:[%s220] sm:$0x1] %v248
      %v250 = vstv %s247
      %251 = vst [vmem:[%s223] sm:$0x1] %v250
      %p252 = scmp.lt.s32.totalorder %s19, 1
      %s253 = scalar_select %p252, %s19, 1
      %s254 = scalar_lea.vmem %s2, %s253
      %p255 = scmp.lt.s32.totalorder %s19, 1
      %s256 = scalar_select %p255, %s19, 1
      %s257 = scalar_lea.vmem %s3, %s256
      // Predicated region
      $region29: #{dice_loss.1} parent=27 // pred_check
        %p258 = pneg %p101
      $region30: #{dice_loss.1} parent=27 // pred_check_branch
        %260 = sbr.rel (%p258) target = $region32
      $region31: #{dice_loss.1} parent=27 // pred_region
        _
      $region32: #{dice_loss.1} parent=27 // pred_fallthru
        _
      // Predicated region
      $region33: #{dice_loss.1} parent=27 // pred_check
        %p261 = pneg %p127
      $region34: #{dice_loss.1} parent=27 // pred_check_branch
        %263 = sbr.rel (%p261) target = $region36
      $region35: #{dice_loss.1} parent=27 // pred_region
        _
      $region36: #{dice_loss.1} parent=27 // pred_fallthru
        _
    $region28: #{dice_loss.1} parent=5 // pred_fallthru
      _
    %p264 = scmp.le.s32.totalorder 2, %s10
    // Predicated region
    $region37: #{dice_loss.1} parent=5 // pred_check
      %p265 = pneg %p264
    $region38: #{dice_loss.1} parent=5 // pred_check_branch
      %267 = sbr.rel (%p265) target = $region40
    $region39: #{dice_loss.1} parent=5 // pred_region
      %s268 = ssub.s32 %s10, 2
      // Predicated region
      $region41: #{dice_loss.1} parent=39 // pred_check
        %p269 = pneg %p107
      $region42: #{dice_loss.1} parent=39 // pred_check_branch
        %271 = sbr.rel (%p269) target = $region44
      $region43: #{dice_loss.1} parent=39 // pred_region
        %p272 = scmp.lt.s32.totalorder %s21, 1
        %s273 = scalar_select %p272, %s21, 1
        %s274 = scalar_lea.vmem %s2, %s273
      $region44: #{dice_loss.1} parent=39 // pred_fallthru
        _
      // Predicated region
      $region45: #{dice_loss.1} parent=39 // pred_check
        %p275 = pneg %p133
      $region46: #{dice_loss.1} parent=39 // pred_check_branch
        %277 = sbr.rel (%p275) target = $region48
      $region47: #{dice_loss.1} parent=39 // pred_region
        %p278 = scmp.lt.s32.totalorder %s21, 1
        %s279 = scalar_select %p278, %s21, 1
        %s280 = scalar_lea.vmem %s3, %s279
      $region48: #{dice_loss.1} parent=39 // pred_fallthru
        _
    $region40: #{dice_loss.1} parent=5 // pred_fallthru
      _
  $region6: #{dice_loss.1} parent=0 // loop_footer
    %s14 = sadd.s32 1, %s10
  $region7: #{dice_loss.1} parent=0 // loop_footer_branch
    %9 = sbr.rel target = $region3
  $region8: #{dice_loss.1} parent=0 // loop_exit
    _

</llo_original>
